<compile_context>
chip_gen: v6e
topology: v6e:2x2x1
jax: 0.10.0
libtpu: 0.0.40
codegen_flags: <defaults>
</compile_context>

<pallas_src>
import functools

import jax
import jax.numpy as jnp
from jax.experimental import pallas as pl
from jax.experimental.pallas import tpu as pltpu


def _round_up(x, m):
    return ((x + m - 1) // m) * m


# ---------------------------------------------------------------------------
# Kernel
# ---------------------------------------------------------------------------
def ppo_kernel(x_ref, w1_ref, b1_ref, w2_ref, b2_ref, w3_ref, b3_ref, out_ref,
               *, action_dim, hidden, split_layer2):
    x = x_ref[...]

    # Layer 1: fused actor||critic -> (TB, 2H). bf16 operands, f32 accumulate.
    h = jnp.dot(x.astype(jnp.bfloat16), w1_ref[...],
                preferred_element_type=jnp.float32) + b1_ref[...]
    h = jnp.maximum(h, 0.0)

    # Layer 2
    hb = h.astype(jnp.bfloat16)
    if split_layer2:
        # v5e (128x128 MXU): two 128-wide dots skip the zero blocks of the
        # block-diagonal weight -> half the layer-2 MXU work.
        w2 = w2_ref[...]                                   # (2H, H) = [aw2; cw2]
        ha = jnp.dot(hb[:, :hidden], w2[:hidden, :],
                     preferred_element_type=jnp.float32)
        hc = jnp.dot(hb[:, hidden:], w2[hidden:, :],
                     preferred_element_type=jnp.float32)
        h = jnp.concatenate([ha, hc], axis=-1) + b2_ref[...]
    else:
        # v6e/v7x (256-wide MXU): single pass over the block-diagonal weight.
        h = jnp.dot(hb, w2_ref[...],
                    preferred_element_type=jnp.float32) + b2_ref[...]
    h = jnp.maximum(h, 0.0)

    # Layer 3 -> lane-dense (TB, 128) slab:
    #   lanes [0, action_dim) = actor logits, lane action_dim = critic value,
    #   remaining lanes = 0 (zero-padded weight columns).
    z = jnp.dot(h.astype(jnp.bfloat16), w3_ref[...],
                preferred_element_type=jnp.float32) + b3_ref[...]

    col = jax.lax.broadcasted_iota(jnp.int32, z.shape, dimension=1)
    is_logit = col < action_dim

    # Numerically-stable softmax over the policy lanes only. Finite sentinel
    # (-1e30) instead of -inf so a pathological z can't produce NaN.
    logits = jnp.where(is_logit, z, -1e30)
    m = jnp.max(logits, axis=-1, keepdims=True)
    e = jnp.exp(logits - m)                      # masked lanes underflow to 0
    denom = jnp.sum(e, axis=-1, keepdims=True)
    inv = pl.reciprocal(denom, approx=True)      # EUP vrcp (otherwise-idle slot)
    inv = inv * (2.0 - denom * inv)              # one Newton step -> f32 accuracy
    policy = e * inv

    # value lane keeps raw layer-3 output; everything else is policy / 0.
    out_ref[...] = jnp.where(col == action_dim, z, policy)


# ---------------------------------------------------------------------------
# Wrapper
# ---------------------------------------------------------------------------
@functools.partial(jax.jit, static_argnames=("action_dim", "split_layer2"))
def ppo_forward(x, packed, action_dim, split_layer2=False):
    """x: (B, state_dim) f32. packed: dict from pack_params(). -> (policy, value)."""
    B, state_dim = x.shape
    out_w = packed["w3"].shape[1]                # lane-dense output width (128)
    hidden = packed["w1"].shape[1] // 2

    # Batch tile: one block for small B; for B > 128 use >= 2 grid steps
    # (so both v7x TensorCores get work), with tiles up to 1024 rows for
    # pipeline efficiency on large / training-sized batches.
    if B <= 128:
        TB = B
    else:
        TB = min(1024, _round_up(pl.cdiv(B, 2), 8))
    Bp = _round_up(B, TB)
    xp = x if Bp == B else jnp.pad(x, ((0, Bp - B), (0, 0)))
    grid = (Bp // TB,)

    kernel = functools.partial(ppo_kernel, action_dim=action_dim,
                               hidden=hidden, split_layer2=split_layer2)

    def _resident(shape):
        # Constant index map -> fetched once; single buffer is enough.
        return pl.BlockSpec(shape, lambda i: (0, 0),
                            pipeline_mode=pl.Buffered(1))

    out = pl.pallas_call(
        kernel,
        out_shape=jax.ShapeDtypeStruct((Bp, out_w), jnp.float32),
        grid=grid,
        in_specs=[
            pl.BlockSpec((TB, state_dim), lambda i: (i, 0)),
            _resident(packed["w1"].shape),
            _resident(packed["b1"].shape),
            _resident(packed["w2"].shape),
            _resident(packed["b2"].shape),
            _resident(packed["w3"].shape),
            _resident(packed["b3"].shape),
        ],
        out_specs=pl.BlockSpec((TB, out_w), lambda i: (i, 0)),
        compiler_params=pltpu.CompilerParams(
            dimension_semantics=("parallel",),
        ),
    )(xp, packed["w1"], packed["b1"], packed["w2"], packed["b2"],
      packed["w3"], packed["b3"])

    policy = out[:B, :action_dim]
    value = out[:B, action_dim:action_dim + 1]
    return policy, value


# ---------------------------------------------------------------------------
# Parameter init / packing
# ---------------------------------------------------------------------------
def init_params(key, state_dim, action_dim, hidden=128):
    """Mimics PyTorch nn.Linear default init. Weights stored as (in, out)."""
    def linear(k, fan_in, fan_out):
        kw, kb = jax.random.split(k)
        bound = 1.0 / jnp.sqrt(fan_in)
        w = jax.random.uniform(kw, (fan_in, fan_out), jnp.float32, -bound, bound)
        b = jax.random.uniform(kb, (1, fan_out), jnp.float32, -bound, bound)
        return w, b

    keys = jax.random.split(key, 6)
    aw1, ab1 = linear(keys[0], state_dim, hidden)
    aw2, ab2 = linear(keys[1], hidden, hidden)
    aw3, ab3 = linear(keys[2], hidden, action_dim)
    cw1, cb1 = linear(keys[3], state_dim, hidden)
    cw2, cb2 = linear(keys[4], hidden, hidden)
    cw3, cb3 = linear(keys[5], hidden, 1)
    return dict(
        aw1=aw1, ab1=ab1, aw2=aw2, ab2=ab2, aw3=aw3, ab3=ab3,
        cw1=cw1, cb1=cb1, cw2=cw2, cb2=cb2, cw3=cw3, cb3=cb3,
    )


def pack_params(p, action_dim, split_layer2=False):
    """Build fused actor||critic weights ONCE; matmul operands stored as bf16."""
    hidden = p["aw2"].shape[0]
    out_w = _round_up(action_dim + 1, 128)       # lane-dense output width

    w1 = jnp.concatenate([p["aw1"], p["cw1"]], axis=1).astype(jnp.bfloat16)  # (S, 2H)
    b1 = jnp.concatenate([p["ab1"], p["cb1"]], axis=1).astype(jnp.float32)   # (1, 2H)

    if split_layer2:
        # (2H, H): rows [0,H)=aw2, [H,2H)=cw2 — used as two 128x128 dots (v5e).
        w2 = jnp.concatenate([p["aw2"], p["cw2"]], axis=0).astype(jnp.bfloat16)
    else:
        zhh = jnp.zeros((hidden, hidden), jnp.float32)
        w2 = jnp.concatenate(
            [jnp.concatenate([p["aw2"], zhh], axis=1),
             jnp.concatenate([zhh, p["cw2"]], axis=1)],
            axis=0).astype(jnp.bfloat16)          # (2H, 2H) block-diagonal
    b2 = jnp.concatenate([p["ab2"], p["cb2"]], axis=1).astype(jnp.float32)   # (1, 2H)

    w3 = jnp.zeros((2 * hidden, out_w), jnp.float32)
    w3 = w3.at[:hidden, :action_dim].set(p["aw3"])
    w3 = w3.at[hidden:, action_dim:action_dim + 1].set(p["cw3"])
    w3 = w3.astype(jnp.bfloat16)
    b3 = jnp.zeros((1, out_w), jnp.float32)
    b3 = b3.at[:, :action_dim].set(p["ab3"])
    b3 = b3.at[:, action_dim:action_dim + 1].set(p["cb3"])

    return dict(w1=w1, b1=b1, w2=w2, b2=b2, w3=w3, b3=b3)


def default_split_layer2():
    """True on chips with 128x128 MXUs (v5 family): split the layer-2 matmul."""
    try:
        kind = jax.devices()[0].device_kind.lower()
    except Exception:
        return False
    return "v5" in kind


# ---------------------------------------------------------------------------
# Pure-JAX reference (replicates the PyTorch forward, f32)
# ---------------------------------------------------------------------------
def reference_forward(x, p):
    h = jax.nn.relu(x @ p["aw1"] + p["ab1"])
    h = jax.nn.relu(h @ p["aw2"] + p["ab2"])
    policy = jax.nn.softmax(h @ p["aw3"] + p["ab3"], axis=-1)
    g = jax.nn.relu(x @ p["cw1"] + p["cb1"])
    g = jax.nn.relu(g @ p["cw2"] + p["cb2"])
    value = g @ p["cw3"] + p["cb3"]
    return policy, value


if __name__ == "__main__":
    key = jax.random.PRNGKey(0)
    k_x, k_p = jax.random.split(key)

    B, state_dim, action_dim = 8, 32, 8
    x = jax.random.normal(k_x, (B, state_dim), jnp.float32)
    params = init_params(k_p, state_dim, action_dim)

    split = default_split_layer2()
    packed = pack_params(params, action_dim, split_layer2=split)  # built once

    policy, value = ppo_forward(x, packed, action_dim, split_layer2=split)
    jax.block_until_ready((policy, value))

    ref_policy, ref_value = reference_forward(x, params)
    assert policy.shape == (B, action_dim) and value.shape == (B, 1)
    # bf16 MXU operands (f32 accumulation) -> tolerances relaxed vs f32 ref.
    assert jnp.allclose(policy, ref_policy, atol=2e-2, rtol=2e-2)
    assert jnp.allclose(value, ref_value, atol=2e-2, rtol=2e-2)
    assert jnp.allclose(jnp.sum(policy, axis=-1), 1.0, atol=1e-4)

    print("KERNEL_OK")
</pallas_src>

<mosaic_0001>
module attributes {stable_mosaic.version = 11 : i64} {
  func.func @ppo_kernel(%arg0: i32, %arg1: memref<8x32xf32, #tpu.memory_space<vmem>>, %arg2: memref<32x256xbf16, #tpu.memory_space<vmem>>, %arg3: memref<1x256xf32, #tpu.memory_space<vmem>>, %arg4: memref<256x256xbf16, #tpu.memory_space<vmem>>, %arg5: memref<1x256xf32, #tpu.memory_space<vmem>>, %arg6: memref<256x128xbf16, #tpu.memory_space<vmem>>, %arg7: memref<1x128xf32, #tpu.memory_space<vmem>>, %arg8: memref<8x128xf32, #tpu.memory_space<vmem>>) attributes {dimension_semantics = [#tpu.dimension_semantics<parallel>], iteration_bounds = array<i64: 1>, scalar_prefetch = 0 : i64, scratch_operands = 0 : i64, tpu.core_type = #tpu.core_type<tc>, window_params = [{transform_indices = @transform_0, window_bounds = array<i64: 8, 32>}, {pipeline_mode = #tpu.pipeline_mode<synchronous>, transform_indices = @transform_1, window_bounds = array<i64: 32, 256>}, {pipeline_mode = #tpu.pipeline_mode<synchronous>, transform_indices = @transform_2, window_bounds = array<i64: 1, 256>}, {pipeline_mode = #tpu.pipeline_mode<synchronous>, transform_indices = @transform_3, window_bounds = array<i64: 256, 256>}, {pipeline_mode = #tpu.pipeline_mode<synchronous>, transform_indices = @transform_4, window_bounds = array<i64: 1, 256>}, {pipeline_mode = #tpu.pipeline_mode<synchronous>, transform_indices = @transform_5, window_bounds = array<i64: 256, 128>}, {pipeline_mode = #tpu.pipeline_mode<synchronous>, transform_indices = @transform_6, window_bounds = array<i64: 1, 128>}, {transform_indices = @transform_7, window_bounds = array<i64: 8, 128>}]} {
    %c0 = arith.constant 0 : index
    %c0_0 = arith.constant 0 : index
    %0 = vector.load %arg1[%c0, %c0_0] : memref<8x32xf32, #tpu.memory_space<vmem>>, vector<8x32xf32>
    %1 = arith.truncf %0 : vector<8x32xf32> to vector<8x32xbf16>
    %c0_1 = arith.constant 0 : index
    %c0_2 = arith.constant 0 : index
    %2 = vector.load %arg2[%c0_1, %c0_2] : memref<32x256xbf16, #tpu.memory_space<vmem>>, vector<32x256xbf16>
    %cst = arith.constant dense<0.000000e+00> : vector<8x256xf32>
    %3 = tpu.matmul %1, %2, %cst {dimension_numbers = #tpu.dot_dimension_numbers<[1], [0], [0], [1], [0, 0, 1, 1], [], []>} : vector<8x32xbf16>, vector<32x256xbf16>, vector<8x256xf32> -> vector<8x256xf32>
    %c0_3 = arith.constant 0 : index
    %c0_4 = arith.constant 0 : index
    %4 = vector.load %arg3[%c0_3, %c0_4] : memref<1x256xf32, #tpu.memory_space<vmem>>, vector<1x256xf32>
    %5 = vector.broadcast %4 : vector<1x256xf32> to vector<8x256xf32>
    %6 = arith.addf %3, %5 : vector<8x256xf32>
    %cst_5 = arith.constant 0.000000e+00 : f32
    %7 = vector.broadcast %cst_5 : f32 to vector<8x256xf32>
    %8 = arith.maximumf %6, %7 : vector<8x256xf32>
    %9 = arith.truncf %8 : vector<8x256xf32> to vector<8x256xbf16>
    %c0_6 = arith.constant 0 : index
    %c0_7 = arith.constant 0 : index
    %10 = vector.load %arg4[%c0_6, %c0_7] : memref<256x256xbf16, #tpu.memory_space<vmem>>, vector<256x256xbf16>
    %cst_8 = arith.constant dense<0.000000e+00> : vector<8x256xf32>
    %11 = tpu.matmul %9, %10, %cst_8 {dimension_numbers = #tpu.dot_dimension_numbers<[1], [0], [0], [1], [0, 0, 1, 1], [], []>} : vector<8x256xbf16>, vector<256x256xbf16>, vector<8x256xf32> -> vector<8x256xf32>
    %c0_9 = arith.constant 0 : index
    %c0_10 = arith.constant 0 : index
    %12 = vector.load %arg5[%c0_9, %c0_10] : memref<1x256xf32, #tpu.memory_space<vmem>>, vector<1x256xf32>
    %13 = vector.broadcast %12 : vector<1x256xf32> to vector<8x256xf32>
    %14 = arith.addf %11, %13 : vector<8x256xf32>
    %cst_11 = arith.constant 0.000000e+00 : f32
    %15 = vector.broadcast %cst_11 : f32 to vector<8x256xf32>
    %16 = arith.maximumf %14, %15 : vector<8x256xf32>
    %17 = arith.truncf %16 : vector<8x256xf32> to vector<8x256xbf16>
    %c0_12 = arith.constant 0 : index
    %c0_13 = arith.constant 0 : index
    %18 = vector.load %arg6[%c0_12, %c0_13] : memref<256x128xbf16, #tpu.memory_space<vmem>>, vector<256x128xbf16>
    %cst_14 = arith.constant dense<0.000000e+00> : vector<8x128xf32>
    %19 = tpu.matmul %17, %18, %cst_14 {dimension_numbers = #tpu.dot_dimension_numbers<[1], [0], [0], [1], [0, 0, 1, 1], [], []>} : vector<8x256xbf16>, vector<256x128xbf16>, vector<8x128xf32> -> vector<8x128xf32>
    %c0_15 = arith.constant 0 : index
    %c0_16 = arith.constant 0 : index
    %20 = vector.load %arg7[%c0_15, %c0_16] : memref<1x128xf32, #tpu.memory_space<vmem>>, vector<1x128xf32>
    %21 = vector.broadcast %20 : vector<1x128xf32> to vector<8x128xf32>
    %22 = arith.addf %19, %21 : vector<8x128xf32>
    %23 = tpu.iota {dimensions = array<i32: 1>} : vector<8x128xi32>
    %c8_i32 = arith.constant 8 : i32
    %24 = vector.broadcast %c8_i32 : i32 to vector<8x128xi32>
    %25 = arith.cmpi slt, %23, %24 : vector<8x128xi32>
    %cst_17 = arith.constant -1.000000e+30 : f32
    %26 = vector.broadcast %cst_17 : f32 to vector<8x128xf32>
    %27 = arith.select %25, %22, %26 : vector<8x128xi1>, vector<8x128xf32>
    %cst_18 = arith.constant dense<0xFF800000> : vector<8xf32>
    %28 = vector.multi_reduction <maximumf>, %27, %cst_18 [1] : vector<8x128xf32> to vector<8xf32>
    %29 = vector.shape_cast %28 : vector<8xf32> to vector<8x1xf32>
    %30 = vector.broadcast %29 : vector<8x1xf32> to vector<8x128xf32>
    %31 = arith.subf %27, %30 : vector<8x128xf32>
    %32 = math.exp %31 : vector<8x128xf32>
    %cst_19 = arith.constant dense<0.000000e+00> : vector<8xf32>
    %33 = vector.multi_reduction <add>, %32, %cst_19 [1] : vector<8x128xf32> to vector<8xf32>
    %34 = vector.shape_cast %33 : vector<8xf32> to vector<8x1xf32>
    %35 = tpu.reciprocal %34 {approx = true} : vector<8x1xf32> -> vector<8x1xf32>
    %36 = arith.mulf %34, %35 : vector<8x1xf32>
    %cst_20 = arith.constant 2.000000e+00 : f32
    %37 = vector.broadcast %cst_20 : f32 to vector<8x1xf32>
    %38 = arith.subf %37, %36 : vector<8x1xf32>
    %39 = arith.mulf %35, %38 : vector<8x1xf32>
    %40 = vector.broadcast %39 : vector<8x1xf32> to vector<8x128xf32>
    %41 = arith.mulf %32, %40 : vector<8x128xf32>
    %c8_i32_21 = arith.constant 8 : i32
    %42 = vector.broadcast %c8_i32_21 : i32 to vector<8x128xi32>
    %43 = arith.cmpi eq, %23, %42 : vector<8x128xi32>
    %44 = arith.select %43, %22, %41 : vector<8x128xi1>, vector<8x128xf32>
    %c0_22 = arith.constant 0 : index
    %c0_23 = arith.constant 0 : index
    %45 = vector.load %arg8[%c0_22, %c0_23] : memref<8x128xf32, #tpu.memory_space<vmem>>, vector<8x128xf32>
    tpu.vector_store %arg8[%c0_22, %c0_23], %44 {strides = array<i32>} : memref<8x128xf32, #tpu.memory_space<vmem>>, vector<8x128xf32>,
    return
  }
  func.func @transform_0(%arg0: i32) -> (i32, i32) {
    %c0_i32 = arith.constant 0 : i32
    %c0_i32_0 = arith.constant 0 : i32
    return %arg0, %c0_i32 : i32, i32
  }
  func.func @transform_1(%arg0: i32) -> (i32, i32) {
    %c0_i32 = arith.constant 0 : i32
    %c0_i32_0 = arith.constant 0 : i32
    %c0_i32_1 = arith.constant 0 : i32
    return %c0_i32, %c0_i32_0 : i32, i32
  }
  func.func @transform_2(%arg0: i32) -> (i32, i32) {
    %c0_i32 = arith.constant 0 : i32
    %c0_i32_0 = arith.constant 0 : i32
    %c0_i32_1 = arith.constant 0 : i32
    return %c0_i32, %c0_i32_0 : i32, i32
  }
  func.func @transform_3(%arg0: i32) -> (i32, i32) {
    %c0_i32 = arith.constant 0 : i32
    %c0_i32_0 = arith.constant 0 : i32
    %c0_i32_1 = arith.constant 0 : i32
    return %c0_i32, %c0_i32_0 : i32, i32
  }
  func.func @transform_4(%arg0: i32) -> (i32, i32) {
    %c0_i32 = arith.constant 0 : i32
    %c0_i32_0 = arith.constant 0 : i32
    %c0_i32_1 = arith.constant 0 : i32
    return %c0_i32, %c0_i32_0 : i32, i32
  }
  func.func @transform_5(%arg0: i32) -> (i32, i32) {
    %c0_i32 = arith.constant 0 : i32
    %c0_i32_0 = arith.constant 0 : i32
    %c0_i32_1 = arith.constant 0 : i32
    return %c0_i32, %c0_i32_0 : i32, i32
  }
  func.func @transform_6(%arg0: i32) -> (i32, i32) {
    %c0_i32 = arith.constant 0 : i32
    %c0_i32_0 = arith.constant 0 : i32
    %c0_i32_1 = arith.constant 0 : i32
    return %c0_i32, %c0_i32_0 : i32, i32
  }
  func.func @transform_7(%arg0: i32) -> (i32, i32) {
    %c0_i32 = arith.constant 0 : i32
    %c0_i32_0 = arith.constant 0 : i32
    return %arg0, %c0_i32 : i32, i32
  }
}

</mosaic_0001>

<llo_original>
// kernel: ppo_forward.1
$region0: #{ppo_forward.1}
  #allocation0 [shape = 'u32[]', space=smem, size = 0x4, offset = 0x4, fixed_abs, tag = 'smem constant byte address 0x4 - core index']
  #allocation1 [shape = 'u32[144,128]{1,0:T(1,128)}', space=vmem, size = 0x12000, scoped, tag = 'internal scratch']
  %s0 = inlined_call_operand.hbm [shape: f32[8,32], index: 0, kind: input, shape index: {}]
  %s1 = inlined_call_operand.hbm [shape: bf16[32,256], index: 1, kind: input, shape index: {}]
  %s2 = inlined_call_operand.hbm [shape: f32[1,256], index: 2, kind: input, shape index: {}]
  %s3 = inlined_call_operand.hbm [shape: bf16[256,256], index: 3, kind: input, shape index: {}]
  %s4 = inlined_call_operand.vmem [shape: f32[1,256], index: 4, kind: input, shape index: {}]
  %s5 = inlined_call_operand.hbm [shape: bf16[256,128], index: 5, kind: input, shape index: {}]
  %s6 = inlined_call_operand.vmem [shape: f32[1,128], index: 6, kind: input, shape index: {}]
  %s7 = inlined_call_operand.vmem [shape: f32[8,128], index: 7, kind: output, shape index: {}]
  %s8 = sld [smem:[#allocation0]]
  $region58: #{ppo_forward.1} parent=0
    _
  %s10 = ssub.s32 1, %s8
  %s11 = scalar_select 0, %s10, %s8
  $region1: #{ppo_forward.1} parent=0
    #allocation2 [shape = 'u8[4096]{0}', space=vmem, size = 0x1000, scoped, tag = 'input window, operand 0, single buffered']
    #allocation3 [shape = 's32[1]{0}', space=sflag, size = 0x4, scoped, tag = 'scoped memory for ppo_forward.1']
    #allocation4 [shape = 'u8[16384]{0}', space=vmem, size = 0x4000, scoped, tag = 'input window, operand 1, single buffered']
    #allocation5 [shape = 's32[1]{0}', space=sflag, size = 0x4, scoped, tag = 'scoped memory for ppo_forward.1']
    #allocation6 [shape = 'u8[1024]{0}', space=vmem, size = 0x400, scoped, tag = 'input window, operand 2, single buffered']
    #allocation7 [shape = 'u8[131072]{0}', space=vmem, size = 0x20000, scoped, tag = 'input window, operand 3, single buffered']
    #allocation8 [shape = 's32[1]{0}', space=sflag, size = 0x4, scoped, tag = 'scoped memory for ppo_forward.1']
    #allocation9 [shape = 'u8[65536]{0}', space=vmem, size = 0x10000, scoped, tag = 'input window, operand 5, single buffered']
    %12 = vsyncpa [#allocation3], 0
    %13 = vsyncpa [#allocation5], 0
    %14 = vsyncpa [#allocation8], 0
    // Predicated region
    $region2: #{ppo_forward.1} parent=1 // pred_check
      _
    $region3: #{ppo_forward.1} parent=1 // pred_check_branch
      %16 = sbr.rel (0) target = $region5
    $region4: #{ppo_forward.1} parent=1 // pred_region
      %s18 = ssub.s32 128, 128
      %19 = vsyncadd [#allocation3], %s18
      %s21 = sshll.u32 [#allocation2], 4
      %s22 = int_to_ptr.vmem [resolvable:$true] %s21
      %24 = dma.hbm_to_vmem [thread:$0]  %s0, 128, %s22, [#allocation3]
    $region5: #{ppo_forward.1} parent=1 // pred_fallthru
      _
    // Predicated region
    $region6: #{ppo_forward.1} parent=1 // pred_check
      _
    $region7: #{ppo_forward.1} parent=1 // pred_check_branch
      %26 = sbr.rel (0) target = $region9
    $region8: #{ppo_forward.1} parent=1 // pred_region
      %s28 = ssub.s32 512, 512
      %29 = vsyncadd [#allocation5], %s28
      %s30 = sshll.u32 [#allocation4], 4
      %s31 = int_to_ptr.vmem [resolvable:$true] %s30
      %36 = dma.hbm_to_vmem [thread:$0]  %s1, 512, %s31, [#allocation5], 128, 128, 8
    $region9: #{ppo_forward.1} parent=1 // pred_fallthru
      _
    // Predicated region
    $region10: #{ppo_forward.1} parent=1 // pred_check
      _
    $region11: #{ppo_forward.1} parent=1 // pred_check_branch
      %38 = sbr.rel (0) target = $region13
    $region12: #{ppo_forward.1} parent=1 // pred_region
      %s40 = ssub.s32 32, 32
      %41 = vsyncadd [#allocation5], %s40
      %s43 = sshll.u32 [#allocation6], 4
      %s44 = int_to_ptr.vmem [resolvable:$true] %s43
      %46 = dma.hbm_to_vmem [thread:$0]  %s2, 32, %s44, [#allocation5]
    $region13: #{ppo_forward.1} parent=1 // pred_fallthru
      _
    // Predicated region
    $region14: #{ppo_forward.1} parent=1 // pred_check
      _
    $region15: #{ppo_forward.1} parent=1 // pred_check_branch
      %48 = sbr.rel (0) target = $region17
    $region16: #{ppo_forward.1} parent=1 // pred_region
      %s50 = ssub.s32 4096, 4096
      %51 = vsyncadd [#allocation8], %s50
      %s52 = sshll.u32 [#allocation7], 4
      %s53 = int_to_ptr.vmem [resolvable:$true] %s52
      %58 = dma.hbm_to_vmem [thread:$0]  %s3, 4096, %s53, [#allocation8], 128, 128, 8
    $region17: #{ppo_forward.1} parent=1 // pred_fallthru
      _
    // Predicated region
    $region18: #{ppo_forward.1} parent=1 // pred_check
      _
    $region19: #{ppo_forward.1} parent=1 // pred_check_branch
      %60 = sbr.rel (0) target = $region21
    $region20: #{ppo_forward.1} parent=1 // pred_region
      _
    $region21: #{ppo_forward.1} parent=1 // pred_fallthru
      _
    // Predicated region
    $region22: #{ppo_forward.1} parent=1 // pred_check
      _
    $region23: #{ppo_forward.1} parent=1 // pred_check_branch
      %62 = sbr.rel (0) target = $region25
    $region24: #{ppo_forward.1} parent=1 // pred_region
      %s64 = ssub.s32 2048, 2048
      %65 = vsyncadd [#allocation8], %s64
      %s66 = sshll.u32 [#allocation9], 4
      %s67 = int_to_ptr.vmem [resolvable:$true] %s66
      %72 = dma.hbm_to_vmem [thread:$0]  %s5, 2048, %s67, [#allocation8], 64, 64, 4
    $region25: #{ppo_forward.1} parent=1 // pred_fallthru
      _
    // Predicated region
    $region26: #{ppo_forward.1} parent=1 // pred_check
      _
    $region27: #{ppo_forward.1} parent=1 // pred_check_branch
      %74 = sbr.rel (0) target = $region29
    $region28: #{ppo_forward.1} parent=1 // pred_region
      _
    $region29: #{ppo_forward.1} parent=1 // pred_fallthru
      _
    // Predicated region
    $region30: #{ppo_forward.1} parent=1 // pred_check
      _
    $region31: #{ppo_forward.1} parent=1 // pred_check_branch
      %76 = sbr.rel (0) target = $region33
    $region32: #{ppo_forward.1} parent=1 // pred_region
      %77 = dma.done [#allocation3], 128
    $region33: #{ppo_forward.1} parent=1 // pred_fallthru
      _
    // Predicated region
    $region34: #{ppo_forward.1} parent=1 // pred_check
      _
    $region35: #{ppo_forward.1} parent=1 // pred_check_branch
      %79 = sbr.rel (0) target = $region37
    $region36: #{ppo_forward.1} parent=1 // pred_region
      %80 = dma.done [#allocation5], 512
    $region37: #{ppo_forward.1} parent=1 // pred_fallthru
      _
    // Predicated region
    $region38: #{ppo_forward.1} parent=1 // pred_check
      _
    $region39: #{ppo_forward.1} parent=1 // pred_check_branch
      %82 = sbr.rel (0) target = $region41
    $region40: #{ppo_forward.1} parent=1 // pred_region
      %83 = dma.done [#allocation5], 32
    $region41: #{ppo_forward.1} parent=1 // pred_fallthru
      _
    // Predicated region
    $region42: #{ppo_forward.1} parent=1 // pred_check
      _
    $region43: #{ppo_forward.1} parent=1 // pred_check_branch
      %85 = sbr.rel (0) target = $region45
    $region44: #{ppo_forward.1} parent=1 // pred_region
      %86 = dma.done [#allocation8], 4096
    $region45: #{ppo_forward.1} parent=1 // pred_fallthru
      _
    // Predicated region
    $region46: #{ppo_forward.1} parent=1 // pred_check
      _
    $region47: #{ppo_forward.1} parent=1 // pred_check_branch
      %88 = sbr.rel (0) target = $region49
    $region48: #{ppo_forward.1} parent=1 // pred_region
      %89 = dma.done [#allocation8], 2048
    $region49: #{ppo_forward.1} parent=1 // pred_fallthru
      _
    %v91 = vld [vmem:[#allocation2] sm:$0xff]
    %v92 = vpack.c.bf16 %v91, %v91
    %v93 = vld [vmem:[#allocation4] sm:$0xff]
    %v94 = vld [vmem:[#allocation4 + $0x8] sm:$0xff]
    %v95 = vld [vmem:[#allocation4 + $0x10] sm:$0xff]
    %v96 = vld [vmem:[#allocation4 + $0x18] sm:$0xff]
    %v97 = vld [vmem:[#allocation6] sm:$0x3]
    %v99 = vlaneseq
    %v100 = vshrl.u32 %v99, 7
    %v101 = vsub.s32 0, %v100
    %v102 = vrot.slane %v97, %v101
    %v103 = vlaneseq
    %v104 = vshrl.u32 %v103, 7
    %v105 = vsub.s32 1, %v104
    %v106 = vrot.slane %v97, %v105
    %v113 = vunpack.c.l.b16 %v93
    %v114 = vunpack.c.h.b16 %v93
    %v115 = vunpack.c.l.b16 %v94
    %v116 = vunpack.c.h.b16 %v94
    %v117 = vunpack.c.l.b16 %v95
    %v118 = vunpack.c.h.b16 %v95
    %v119 = vunpack.c.l.b16 %v96
    %v120 = vunpack.c.h.b16 %v96
    %v121 = vpack.c.b16 %v115, %v113
    %v122 = vpack.c.b16 %v116, %v114
    %v123 = vpack.c.b16 %v119, %v117
    %v124 = vpack.c.b16 %v120, %v118
    %vm129 = vcmask 261120
    %v131 = vsel %vm129, %v92, 0
    %133 = vmatprep.subr.bf16.mxu0 0
    %134 = vmatpush1.bf16.msra.mxu0 0
    %135 = vmatprep.subr.bf16.mxu0 0
    %136 = vmatpush1.bf16.msra.mxu0 0
    %137 = vmatprep.subr.bf16.mxu0 0
    %138 = vmatpush1.bf16.msra.mxu0 0
    %139 = vmatprep.subr.bf16.mxu0 0
    %140 = vmatpush1.bf16.msra.mxu0 0
    %141 = vmatprep.subr.bf16.mxu0 0
    %142 = vmatpush1.bf16.msra.mxu0 0
    %143 = vmatprep.subr.bf16.mxu0 0
    %144 = vmatpush1.bf16.msra.mxu0 0
    %145 = vmatprep.subr.bf16.mxu0 %v124
    %146 = vmatpush1.bf16.msra.mxu0 %v123
    %147 = vmatprep.subr.bf16.mxu0 %v122
    %148 = vmatpush1.bf16.msra.mxu0 %v121
    %149 = vmatprep.subr.bf16.mxu0 0
    %150 = vmatpush2.bf16.msra.mxu0 0
    %151 = vmatprep.subr.bf16.mxu0 0
    %152 = vmatpush2.bf16.msra.mxu0 0
    %153 = vmatprep.subr.bf16.mxu0 0
    %154 = vmatpush2.bf16.msra.mxu0 0
    %155 = vmatprep.subr.bf16.mxu0 0
    %156 = vmatpush2.bf16.msra.mxu0 0
    %157 = vmatprep.subr.bf16.mxu0 0
    %158 = vmatpush2.bf16.msra.mxu0 0
    %159 = vmatprep.subr.bf16.mxu0 0
    %160 = vmatpush2.bf16.msra.mxu0 0
    %161 = vmatprep.subr.bf16.mxu0 0
    %162 = vmatpush2.bf16.msra.mxu0 0
    %163 = vmatprep.subr.bf16.mxu0 0
    %164 = vmatpush2.bf16.msra.mxu0 0
    %165 = vmatprep.mubr.bf16.mxu0 0
    %166 = vmatmul.mubr.bf16.gmra.mxu0 %v131
    %v167 = vpop.f32.mrf.mxu0
    %v168 = vadd.f32 %v102, %v167
    %v169 = vpop.f32.mrf.mxu0
    %v170 = vadd.f32 %v106, %v169
    %v171 = vpop.f32.mrf.mxu0
    %v172 = vpop.f32.mrf.mxu0
    %173 = vdwg.mxu0
    %v174 = vmax.f32 %v168, 0.0
    %v175 = vmax.f32 %v170, 0.0
    %v176 = vpack.c.bf16 %v174, %v174
    %v177 = vpack.c.bf16 %v175, %v175
    %v178 = vld [vmem:[#allocation7] sm:$0xff]
    %v179 = vld [vmem:[#allocation7 + $0x8] sm:$0xff]
    %v180 = vld [vmem:[#allocation7 + $0x10] sm:$0xff]
    %v181 = vld [vmem:[#allocation7 + $0x18] sm:$0xff]
    %v182 = vld [vmem:[#allocation7 + $0x20] sm:$0xff]
    %v183 = vld [vmem:[#allocation7 + $0x28] sm:$0xff]
    %v184 = vld [vmem:[#allocation7 + $0x30] sm:$0xff]
    %v185 = vld [vmem:[#allocation7 + $0x38] sm:$0xff]
    %v186 = vld [vmem:[#allocation7 + $0x40] sm:$0xff]
    %v187 = vld [vmem:[#allocation7 + $0x48] sm:$0xff]
    %v188 = vld [vmem:[#allocation7 + $0x50] sm:$0xff]
    %v189 = vld [vmem:[#allocation7 + $0x58] sm:$0xff]
    %v190 = vld [vmem:[#allocation7 + $0x60] sm:$0xff]
    %v191 = vld [vmem:[#allocation7 + $0x68] sm:$0xff]
    %v192 = vld [vmem:[#allocation7 + $0x70] sm:$0xff]
    %v193 = vld [vmem:[#allocation7 + $0x78] sm:$0xff]
    %v194 = vld [vmem:[#allocation7 + $0x80] sm:$0xff]
    %v195 = vld [vmem:[#allocation7 + $0x88] sm:$0xff]
    %v196 = vld [vmem:[#allocation7 + $0x90] sm:$0xff]
    %v197 = vld [vmem:[#allocation7 + $0x98] sm:$0xff]
    %v198 = vld [vmem:[#allocation7 + $0xa0] sm:$0xff]
    %v199 = vld [vmem:[#allocation7 + $0xa8] sm:$0xff]
    %v200 = vld [vmem:[#allocation7 + $0xb0] sm:$0xff]
    %v201 = vld [vmem:[#allocation7 + $0xb8] sm:$0xff]
    %v202 = vld [vmem:[#allocation7 + $0xc0] sm:$0xff]
    %v203 = vld [vmem:[#allocation7 + $0xc8] sm:$0xff]
    %v204 = vld [vmem:[#allocation7 + $0xd0] sm:$0xff]
    %v205 = vld [vmem:[#allocation7 + $0xd8] sm:$0xff]
    %v206 = vld [vmem:[#allocation7 + $0xe0] sm:$0xff]
    %v207 = vld [vmem:[#allocation7 + $0xe8] sm:$0xff]
    %v208 = vld [vmem:[#allocation7 + $0xf0] sm:$0xff]
    %v209 = vld [vmem:[#allocation7 + $0xf8] sm:$0xff]
    %v210 = vld [vmem:[%s4] sm:$0x3]
    %v212 = vlaneseq
    %v213 = vshrl.u32 %v212, 7
    %v214 = vsub.s32 0, %v213
    %v215 = vrot.slane %v210, %v214
    %v216 = vlaneseq
    %v217 = vshrl.u32 %v216, 7
    %v218 = vsub.s32 1, %v217
    %v219 = vrot.slane %v210, %v218
    %v254 = vunpack.c.l.b16 %v178
    %v255 = vunpack.c.h.b16 %v178
    %v256 = vunpack.c.l.b16 %v179
    %v257 = vunpack.c.h.b16 %v179
    %v258 = vunpack.c.l.b16 %v180
    %v259 = vunpack.c.h.b16 %v180
    %v260 = vunpack.c.l.b16 %v181
    %v261 = vunpack.c.h.b16 %v181
    %v262 = vunpack.c.l.b16 %v182
    %v263 = vunpack.c.h.b16 %v182
    %v264 = vunpack.c.l.b16 %v183
    %v265 = vunpack.c.h.b16 %v183
    %v266 = vunpack.c.l.b16 %v184
    %v267 = vunpack.c.h.b16 %v184
    %v268 = vunpack.c.l.b16 %v185
    %v269 = vunpack.c.h.b16 %v185
    %v270 = vunpack.c.l.b16 %v186
    %v271 = vunpack.c.h.b16 %v186
    %v272 = vunpack.c.l.b16 %v187
    %v273 = vunpack.c.h.b16 %v187
    %v274 = vunpack.c.l.b16 %v188
    %v275 = vunpack.c.h.b16 %v188
    %v276 = vunpack.c.l.b16 %v189
    %v277 = vunpack.c.h.b16 %v189
    %v278 = vunpack.c.l.b16 %v190
    %v279 = vunpack.c.h.b16 %v190
    %v280 = vunpack.c.l.b16 %v191
    %v281 = vunpack.c.h.b16 %v191
    %v282 = vunpack.c.l.b16 %v192
    %v283 = vunpack.c.h.b16 %v192
    %v284 = vunpack.c.l.b16 %v193
    %v285 = vunpack.c.h.b16 %v193
    %v286 = vunpack.c.l.b16 %v194
    %v287 = vunpack.c.h.b16 %v194
    %v288 = vunpack.c.l.b16 %v195
    %v289 = vunpack.c.h.b16 %v195
    %v290 = vunpack.c.l.b16 %v196
    %v291 = vunpack.c.h.b16 %v196
    %v292 = vunpack.c.l.b16 %v197
    %v293 = vunpack.c.h.b16 %v197
    %v294 = vunpack.c.l.b16 %v198
    %v295 = vunpack.c.h.b16 %v198
    %v296 = vunpack.c.l.b16 %v199
    %v297 = vunpack.c.h.b16 %v199
    %v298 = vunpack.c.l.b16 %v200
    %v299 = vunpack.c.h.b16 %v200
    %v300 = vunpack.c.l.b16 %v201
    %v301 = vunpack.c.h.b16 %v201
    %v302 = vunpack.c.l.b16 %v202
    %v303 = vunpack.c.h.b16 %v202
    %v304 = vunpack.c.l.b16 %v203
    %v305 = vunpack.c.h.b16 %v203
    %v306 = vunpack.c.l.b16 %v204
    %v307 = vunpack.c.h.b16 %v204
    %v308 = vunpack.c.l.b16 %v205
    %v309 = vunpack.c.h.b16 %v205
    %v310 = vunpack.c.l.b16 %v206
    %v311 = vunpack.c.h.b16 %v206
    %v312 = vunpack.c.l.b16 %v207
    %v313 = vunpack.c.h.b16 %v207
    %v314 = vunpack.c.l.b16 %v208
    %v315 = vunpack.c.h.b16 %v208
    %v316 = vunpack.c.l.b16 %v209
    %v317 = vunpack.c.h.b16 %v209
    %v318 = vpack.c.b16 %v256, %v254
    %v319 = vpack.c.b16 %v257, %v255
    %v320 = vpack.c.b16 %v260, %v258
    %v321 = vpack.c.b16 %v261, %v259
    %v322 = vpack.c.b16 %v264, %v262
    %v323 = vpack.c.b16 %v265, %v263
    %v324 = vpack.c.b16 %v268, %v266
    %v325 = vpack.c.b16 %v269, %v267
    %v326 = vpack.c.b16 %v272, %v270
    %v327 = vpack.c.b16 %v273, %v271
    %v328 = vpack.c.b16 %v276, %v274
    %v329 = vpack.c.b16 %v277, %v275
    %v330 = vpack.c.b16 %v280, %v278
    %v331 = vpack.c.b16 %v281, %v279
    %v332 = vpack.c.b16 %v284, %v282
    %v333 = vpack.c.b16 %v285, %v283
    %v334 = vpack.c.b16 %v288, %v286
    %v335 = vpack.c.b16 %v289, %v287
    %v336 = vpack.c.b16 %v292, %v290
    %v337 = vpack.c.b16 %v293, %v291
    %v338 = vpack.c.b16 %v296, %v294
    %v339 = vpack.c.b16 %v297, %v295
    %v340 = vpack.c.b16 %v300, %v298
    %v341 = vpack.c.b16 %v301, %v299
    %v342 = vpack.c.b16 %v304, %v302
    %v343 = vpack.c.b16 %v305, %v303
    %v344 = vpack.c.b16 %v308, %v306
    %v345 = vpack.c.b16 %v309, %v307
    %v346 = vpack.c.b16 %v312, %v310
    %v347 = vpack.c.b16 %v313, %v311
    %v348 = vpack.c.b16 %v316, %v314
    %v349 = vpack.c.b16 %v317, %v315
    %382 = vmatprep.subr.bf16.mxu0 %v333
    %383 = vmatpush1.bf16.msra.mxu0 %v332
    %384 = vmatprep.subr.bf16.mxu0 %v331
    %385 = vmatpush1.bf16.msra.mxu0 %v330
    %386 = vmatprep.subr.bf16.mxu0 %v329
    %387 = vmatpush1.bf16.msra.mxu0 %v328
    %388 = vmatprep.subr.bf16.mxu0 %v327
    %389 = vmatpush1.bf16.msra.mxu0 %v326
    %390 = vmatprep.subr.bf16.mxu0 %v325
    %391 = vmatpush1.bf16.msra.mxu0 %v324
    %392 = vmatprep.subr.bf16.mxu0 %v323
    %393 = vmatpush1.bf16.msra.mxu0 %v322
    %394 = vmatprep.subr.bf16.mxu0 %v321
    %395 = vmatpush1.bf16.msra.mxu0 %v320
    %396 = vmatprep.subr.bf16.mxu0 %v319
    %397 = vmatpush1.bf16.msra.mxu0 %v318
    %398 = vmatprep.subr.bf16.mxu0 %v349
    %399 = vmatpush2.bf16.msra.mxu0 %v348
    %400 = vmatprep.subr.bf16.mxu0 %v347
    %401 = vmatpush2.bf16.msra.mxu0 %v346
    %402 = vmatprep.subr.bf16.mxu0 %v345
    %403 = vmatpush2.bf16.msra.mxu0 %v344
    %404 = vmatprep.subr.bf16.mxu0 %v343
    %405 = vmatpush2.bf16.msra.mxu0 %v342
    %406 = vmatprep.subr.bf16.mxu0 %v341
    %407 = vmatpush2.bf16.msra.mxu0 %v340
    %408 = vmatprep.subr.bf16.mxu0 %v339
    %409 = vmatpush2.bf16.msra.mxu0 %v338
    %410 = vmatprep.subr.bf16.mxu0 %v337
    %411 = vmatpush2.bf16.msra.mxu0 %v336
    %412 = vmatprep.subr.bf16.mxu0 %v335
    %413 = vmatpush2.bf16.msra.mxu0 %v334
    %414 = vmatprep.mubr.bf16.mxu0 %v177
    %415 = vmatmul.mubr.bf16.gmra.mxu0 %v176
    %v416 = vpop.f32.mrf.mxu0
    %v417 = vadd.f32 %v215, %v416
    %v418 = vpop.f32.mrf.mxu0
    %v419 = vadd.f32 %v219, %v418
    %v420 = vpop.f32.mrf.mxu0
    %v421 = vpop.f32.mrf.mxu0
    %422 = vdwg.mxu0
    %v423 = vmax.f32 %v417, 0.0
    %v424 = vmax.f32 %v419, 0.0
    %v425 = vpack.c.bf16 %v423, %v423
    %v426 = vpack.c.bf16 %v424, %v424
    %v427 = vld [vmem:[#allocation9] sm:$0xf]
    %v428 = vld [vmem:[#allocation9 + $0x4] sm:$0xf]
    %v429 = vld [vmem:[#allocation9 + $0x8] sm:$0xf]
    %v430 = vld [vmem:[#allocation9 + $0xc] sm:$0xf]
    %v431 = vld [vmem:[#allocation9 + $0x10] sm:$0xf]
    %v432 = vld [vmem:[#allocation9 + $0x14] sm:$0xf]
    %v433 = vld [vmem:[#allocation9 + $0x18] sm:$0xf]
    %v434 = vld [vmem:[#allocation9 + $0x1c] sm:$0xf]
    %v435 = vld [vmem:[#allocation9 + $0x20] sm:$0xf]
    %v436 = vld [vmem:[#allocation9 + $0x24] sm:$0xf]
    %v437 = vld [vmem:[#allocation9 + $0x28] sm:$0xf]
    %v438 = vld [vmem:[#allocation9 + $0x2c] sm:$0xf]
    %v439 = vld [vmem:[#allocation9 + $0x30] sm:$0xf]
    %v440 = vld [vmem:[#allocation9 + $0x34] sm:$0xf]
    %v441 = vld [vmem:[#allocation9 + $0x38] sm:$0xf]
    %v442 = vld [vmem:[#allocation9 + $0x3c] sm:$0xf]
    %v443 = vld [vmem:[#allocation9 + $0x40] sm:$0xf]
    %v444 = vld [vmem:[#allocation9 + $0x44] sm:$0xf]
    %v445 = vld [vmem:[#allocation9 + $0x48] sm:$0xf]
    %v446 = vld [vmem:[#allocation9 + $0x4c] sm:$0xf]
    %v447 = vld [vmem:[#allocation9 + $0x50] sm:$0xf]
    %v448 = vld [vmem:[#allocation9 + $0x54] sm:$0xf]
    %v449 = vld [vmem:[#allocation9 + $0x58] sm:$0xf]
    %v450 = vld [vmem:[#allocation9 + $0x5c] sm:$0xf]
    %v451 = vld [vmem:[#allocation9 + $0x60] sm:$0xf]
    %v452 = vld [vmem:[#allocation9 + $0x64] sm:$0xf]
    %v453 = vld [vmem:[#allocation9 + $0x68] sm:$0xf]
    %v454 = vld [vmem:[#allocation9 + $0x6c] sm:$0xf]
    %v455 = vld [vmem:[#allocation9 + $0x70] sm:$0xf]
    %v456 = vld [vmem:[#allocation9 + $0x74] sm:$0xf]
    %v457 = vld [vmem:[#allocation9 + $0x78] sm:$0xf]
    %v458 = vld [vmem:[#allocation9 + $0x7c] sm:$0xf]
    %v459 = vld [vmem:[%s6] sm:$0x1]
    %v461 = vlaneseq
    %v462 = vshrl.u32 %v461, 7
    %v463 = vsub.s32 0, %v462
    %v464 = vrot.slane %v459, %v463
    %v498 = vunpack.c.l.b16 %v427
    %v499 = vunpack.c.l.b16 %v428
    %v500 = vunpack.c.l.b16 %v429
    %v501 = vunpack.c.l.b16 %v430
    %v502 = vunpack.c.l.b16 %v431
    %v503 = vunpack.c.l.b16 %v432
    %v504 = vunpack.c.l.b16 %v433
    %v505 = vunpack.c.l.b16 %v434
    %v506 = vunpack.c.l.b16 %v435
    %v507 = vunpack.c.l.b16 %v436
    %v508 = vunpack.c.l.b16 %v437
    %v509 = vunpack.c.l.b16 %v438
    %v510 = vunpack.c.l.b16 %v439
    %v511 = vunpack.c.l.b16 %v440
    %v512 = vunpack.c.l.b16 %v441
    %v513 = vunpack.c.l.b16 %v442
    %v514 = vunpack.c.l.b16 %v443
    %v515 = vunpack.c.l.b16 %v444
    %v516 = vunpack.c.l.b16 %v445
    %v517 = vunpack.c.l.b16 %v446
    %v518 = vunpack.c.l.b16 %v447
    %v519 = vunpack.c.l.b16 %v448
    %v520 = vunpack.c.l.b16 %v449
    %v521 = vunpack.c.l.b16 %v450
    %v522 = vunpack.c.l.b16 %v451
    %v523 = vunpack.c.l.b16 %v452
    %v524 = vunpack.c.l.b16 %v453
    %v525 = vunpack.c.l.b16 %v454
    %v526 = vunpack.c.l.b16 %v455
    %v527 = vunpack.c.l.b16 %v456
    %v528 = vunpack.c.l.b16 %v457
    %v529 = vunpack.c.l.b16 %v458
    %v530 = vpack.c.b16 %v499, %v498
    %v531 = vpack.c.b16 %v501, %v500
    %v532 = vpack.c.b16 %v503, %v502
    %v533 = vpack.c.b16 %v505, %v504
    %v534 = vpack.c.b16 %v507, %v506
    %v535 = vpack.c.b16 %v509, %v508
    %v536 = vpack.c.b16 %v511, %v510
    %v537 = vpack.c.b16 %v513, %v512
    %v538 = vpack.c.b16 %v515, %v514
    %v539 = vpack.c.b16 %v517, %v516
    %v540 = vpack.c.b16 %v519, %v518
    %v541 = vpack.c.b16 %v521, %v520
    %v542 = vpack.c.b16 %v523, %v522
    %v543 = vpack.c.b16 %v525, %v524
    %v544 = vpack.c.b16 %v527, %v526
    %v545 = vpack.c.b16 %v529, %v528
    %562 = vmatprep.subr.bf16.mxu0 0
    %563 = vmatpush1.bf16.msra.mxu0 %v537
    %564 = vmatprep.subr.bf16.mxu0 0
    %565 = vmatpush1.bf16.msra.mxu0 %v536
    %566 = vmatprep.subr.bf16.mxu0 0
    %567 = vmatpush1.bf16.msra.mxu0 %v535
    %568 = vmatprep.subr.bf16.mxu0 0
    %569 = vmatpush1.bf16.msra.mxu0 %v534
    %570 = vmatprep.subr.bf16.mxu0 0
    %571 = vmatpush1.bf16.msra.mxu0 %v533
    %572 = vmatprep.subr.bf16.mxu0 0
    %573 = vmatpush1.bf16.msra.mxu0 %v532
    %574 = vmatprep.subr.bf16.mxu0 0
    %575 = vmatpush1.bf16.msra.mxu0 %v531
    %576 = vmatprep.subr.bf16.mxu0 0
    %577 = vmatpush1.bf16.msra.mxu0 %v530
    %578 = vmatprep.subr.bf16.mxu0 0
    %579 = vmatpush2.bf16.msra.mxu0 %v545
    %580 = vmatprep.subr.bf16.mxu0 0
    %581 = vmatpush2.bf16.msra.mxu0 %v544
    %582 = vmatprep.subr.bf16.mxu0 0
    %583 = vmatpush2.bf16.msra.mxu0 %v543
    %584 = vmatprep.subr.bf16.mxu0 0
    %585 = vmatpush2.bf16.msra.mxu0 %v542
    %586 = vmatprep.subr.bf16.mxu0 0
    %587 = vmatpush2.bf16.msra.mxu0 %v541
    %588 = vmatprep.subr.bf16.mxu0 0
    %589 = vmatpush2.bf16.msra.mxu0 %v540
    %590 = vmatprep.subr.bf16.mxu0 0
    %591 = vmatpush2.bf16.msra.mxu0 %v539
    %592 = vmatprep.subr.bf16.mxu0 0
    %593 = vmatpush2.bf16.msra.mxu0 %v538
    %594 = vmatprep.mubr.bf16.mxu0 %v426
    %595 = vmatmul.mubr.bf16.gmra.mxu0 %v425
    %v596 = vpop.f32.mrf.mxu0
    %v597 = vadd.f32 %v464, %v596
    %v598 = vpop.f32.mrf.mxu0
    %v599 = vpop.f32.mrf.mxu0
    %v600 = vpop.f32.mrf.mxu0
    %601 = vdwg.mxu0
    %v602 = vlaneseq
    %v603 = vand.u32 %v602, 127
    %vm604 = vcmp.lt.s32.totalorder %v603, 8
    %v605 = vsel %vm604, %v597, -1e+30
    %606 = vmax.xlane.f32.xlu0 %v605
    %v607 = vpop.xlane.xlu0 %606
    %v608 = vsub.f32 %v605, %v607
    %v609 = vmul.f32 %v608, 1.442695
    %v610 = vpow.pop %v609
    %611 = vadd.xlane.f32.xlu0 %v610
    %v612 = vpop.xlane.xlu0 %611
    %v613 = vrcp.pop %v612
    %v614 = vmul.f32 %v612, %v613
    %v615 = vsub.f32 2.0, %v614
    %v616 = vmul.f32 %v613, %v615
    %v617 = vmul.f32 %v610, %v616
    %vm618 = vcmp.eq.s32.totalorder %v603, 8
    %v619 = vsel %vm618, %v597, %v617
    %620 = vst [vmem:[%s7] sm:$0xff] %v619
    // Predicated region
    $region50: #{ppo_forward.1} parent=1 // pred_check
      _
    $region51: #{ppo_forward.1} parent=1 // pred_check_branch
      %622 = sbr.rel (0) target = $region53
    $region52: #{ppo_forward.1} parent=1 // pred_region
      _
    $region53: #{ppo_forward.1} parent=1 // pred_fallthru
      _
    // Predicated region
    $region54: #{ppo_forward.1} parent=1 // pred_check
      _
    $region55: #{ppo_forward.1} parent=1 // pred_check_branch
      %624 = sbr.rel (0) target = $region57
    $region56: #{ppo_forward.1} parent=1 // pred_region
      _
    $region57: #{ppo_forward.1} parent=1 // pred_fallthru
      _
    %625 = vsyncpa [#allocation3], 1
    %626 = vsyncpa [#allocation5], 1
    %627 = vsyncpa [#allocation8], 1

</llo_original>
